<compile_context>
chip_gen: v5e
topology: v5e:2x2
jax: 0.10.0
libtpu: 0.0.40
codegen_flags: <defaults>
</compile_context>

<pallas_src>
import functools

import jax
import jax.numpy as jnp
from jax.experimental import pallas as pl
from jax.experimental.pallas import tpu as pltpu


# ----------------------------- kernel -----------------------------

def feedforward_kernel(x_ref, g_ref, b_ref, w1_ref, b1_ref, w2_ref, b2_ref,
                       o_ref, h_ref, acc_ref, *, eps, d_actual):
    """Grid = (row_tiles, hidden_chunks); k = hidden-chunk index (innermost)."""
    k = pl.program_id(1)
    nk = pl.num_programs(1)

    # ---- LayerNorm once per row tile (k == 0); stash bf16 result in scratch ----
    @pl.when(k == 0)
    def _():
        x = x_ref[...].astype(jnp.float32)            # (TN, Dp)
        dp = x.shape[-1]
        inv_d = jnp.float32(1.0 / d_actual)
        if d_actual == dp:
            mean = jnp.mean(x, axis=-1, keepdims=True)
            cent = x - mean
            var = jnp.mean(cent * cent, axis=-1, keepdims=True)
        else:
            # Padded feature lanes are zero; mask them out of the variance and
            # divide sums by the true D (two-pass form, no cancellation).
            col = jax.lax.broadcasted_iota(jnp.int32, x.shape, dimension=1)
            mask = (col < d_actual).astype(jnp.float32)
            mean = jnp.sum(x, axis=-1, keepdims=True) * inv_d
            cent = x - mean
            var = jnp.sum(cent * cent * mask, axis=-1, keepdims=True) * inv_d
        h = cent * jax.lax.rsqrt(var + eps)
        # Padded gamma/beta are zero => padded lanes of h become exactly 0.
        h = h * g_ref[...].astype(jnp.float32) + b_ref[...].astype(jnp.float32)
        h_ref[...] = h.astype(jnp.bfloat16)
        acc_ref[...] = jnp.zeros_like(acc_ref)

    # ---- Linear 1 chunk: (TN, Dp) @ (Dp, Hc), bf16 in, f32 accumulation ----
    h1 = jnp.dot(h_ref[...], w1_ref[...], preferred_element_type=jnp.float32)
    h1 = h1 + b1_ref[...].astype(jnp.float32)

    # ---- GELU (exact erf form == nn.GELU() default) ----
    # TODO(synk): switch to tanh approximation (EUP slot) only if a bundle dump
    # shows VALU saturated and tolerance permits.
    inv_sqrt2 = jnp.float32(0.7071067811865476)
    h1 = 0.5 * h1 * (1.0 + jax.lax.erf(h1 * inv_sqrt2))

    # (Dropout is identity in eval / p == 0.0.)

    # ---- Linear 2 chunk, accumulated: (TN, Hc) @ (Hc, Dp) ----
    acc_ref[...] += jnp.dot(h1.astype(jnp.bfloat16), w2_ref[...],
                            preferred_element_type=jnp.float32)

    # ---- Finalize on the last hidden chunk ----
    @pl.when(k == nk - 1)
    def _():
        o_ref[...] = (acc_ref[...] + b2_ref[...].astype(jnp.float32)
                      ).astype(o_ref.dtype)


# ----------------------------- sizing helpers -----------------------------

def _round_up(x, m):
    return ((x + m - 1) // m) * m


def _vmem_limit_bytes():
    """Per-generation VMEM limit with headroom (v5e/v6e ~100 MiB, v7x ~51 MiB)."""
    mib = 1024 * 1024
    try:
        cap = int(pltpu.get_tpu_info().vmem_capacity_bytes)
    except Exception:
        cap = 64 * mib  # conservative fallback
    return int(max(32 * mib, min(cap - 12 * mib, int(cap * 0.8))))


def _footprint_bytes(tn, dp, hc, act_bytes):
    """Rough VMEM footprint for one grid step (double-buffered I/O + scratch)."""
    total = 0
    total += 2 * tn * dp * act_bytes        # x tile (double-buffered)
    total += 2 * tn * dp * act_bytes        # out tile (double-buffered)
    total += tn * dp * 4                    # f32 accumulator scratch
    total += tn * dp * 2                    # bf16 normalized-x scratch
    total += 2 * dp * hc * 2                # w1 chunk (bf16, double-buffered)
    total += 2 * hc * dp * 2                # w2 chunk (bf16, double-buffered)
    total += 2 * (2 * dp + hc) * 4 * 2      # gamma/beta/b1/b2 (tiny)
    total += tn * hc * 4                    # live h1 intermediate (f32, in vregs/VMEM)
    return total


def _choose_row_tile(rows, dp, hc, act_bytes, budget):
    """Largest 256/128-aligned row tile that fits the VMEM budget; rows are padded
    to the tile afterwards (no 'rows % t == 0' requirement)."""
    rows8 = _round_up(max(rows, 1), 8)
    for t in (512, 256, 128, 64, 32, 16, 8):
        if t > rows8:
            continue
        if _footprint_bytes(t, dp, hc, act_bytes) <= budget:
            return t
    return 8


# ----------------------------- wrapper -----------------------------

def feedforward(x, params, *, eps=1e-5):
    """x: (..., D). Returns same shape/dtype as x."""
    orig_shape = x.shape
    D = orig_shape[-1]
    x2 = x.reshape(-1, D)
    rows = x2.shape[0]

    H = params["w1"].shape[1]

    # Lane-dense feature dims (multiples of 128); hidden streamed in Hc chunks.
    Dp = max(128, _round_up(D, 128))
    Hc = min(512, max(128, _round_up(H, 128)))
    Hp = _round_up(max(H, Hc), Hc)

    vmem_limit = _vmem_limit_bytes()
    act_bytes = jnp.dtype(x.dtype).itemsize
    tn = _choose_row_tile(rows, Dp, Hc, act_bytes, int(vmem_limit * 0.8))
    rows_pad = _round_up(rows, tn)

    # Zero-pad operands; padded lanes are numerically inert (see kernel comments).
    x2 = jnp.pad(x2, ((0, rows_pad - rows), (0, Dp - D)))
    g = jnp.pad(params["ln_g"], ((0, 0), (0, Dp - D)))
    b = jnp.pad(params["ln_b"], ((0, 0), (0, Dp - D)))
    w1 = jnp.pad(params["w1"], ((0, Dp - D), (0, Hp - H)))
    b1 = jnp.pad(params["b1"], ((0, 0), (0, Hp - H)))
    w2 = jnp.pad(params["w2"], ((0, Hp - H), (0, Dp - D)))
    b2 = jnp.pad(params["b2"], ((0, 0), (0, Dp - D)))

    grid = (rows_pad // tn, Hp // Hc)

    kernel = functools.partial(feedforward_kernel, eps=eps, d_actual=D)

    cost = pl.CostEstimate(
        flops=int(4 * rows_pad * Dp * Hp),
        transcendentals=int(rows_pad * Hp),
        bytes_accessed=int(2 * rows_pad * Dp * act_bytes
                           + grid[0] * 2 * Dp * Hp * 2),
    )

    out = pl.pallas_call(
        kernel,
        out_shape=jax.ShapeDtypeStruct((rows_pad, Dp), x.dtype),
        grid_spec=pltpu.PrefetchScalarGridSpec(
            num_scalar_prefetch=0,
            grid=grid,
            in_specs=[
                pl.BlockSpec((tn, Dp), lambda i, k: (i, 0)),   # x rows (resident over k)
                pl.BlockSpec((1, Dp), lambda i, k: (0, 0)),    # ln gamma
                pl.BlockSpec((1, Dp), lambda i, k: (0, 0)),    # ln beta
                pl.BlockSpec((Dp, Hc), lambda i, k: (0, k)),   # w1 chunk (columns)
                pl.BlockSpec((1, Hc), lambda i, k: (0, k)),    # b1 chunk
                pl.BlockSpec((Hc, Dp), lambda i, k: (k, 0)),   # w2 chunk (rows)
                pl.BlockSpec((1, Dp), lambda i, k: (0, 0)),    # b2
            ],
            out_specs=pl.BlockSpec((tn, Dp), lambda i, k: (i, 0)),
            scratch_shapes=[
                pltpu.VMEM((tn, Dp), jnp.bfloat16),   # normalized x (LN done once)
                pltpu.VMEM((tn, Dp), jnp.float32),    # second-matmul accumulator
            ],
        ),
        compiler_params=pltpu.CompilerParams(
            dimension_semantics=("parallel", "arbitrary"),
            vmem_limit_bytes=vmem_limit,
        ),
        cost_estimate=cost,
    )(x2, g, b, w1, b1, w2, b2)

    out = out[:rows, :D]
    return out.reshape(orig_shape)


# ----------------------------- parameter init -----------------------------

def init_params(key, *, dim, hidden_dim):
    k1, k2 = jax.random.split(key)
    w1_f32 = jax.random.normal(k1, (dim, hidden_dim), jnp.float32) * 0.02
    w2_f32 = jax.random.normal(k2, (hidden_dim, dim), jnp.float32) * 0.02
    params = dict(
        ln_g=jnp.ones((1, dim), jnp.float32),
        ln_b=jnp.zeros((1, dim), jnp.float32),
        # Weights stored bf16 (halves HBM/VMEM traffic, MXU bf16 path); the
        # kernel still accumulates both matmuls in f32.
        w1=w1_f32.astype(jnp.bfloat16),
        b1=jnp.zeros((1, hidden_dim), jnp.float32),
        w2=w2_f32.astype(jnp.bfloat16),
        b2=jnp.zeros((1, dim), jnp.float32),
    )
    ref_params = dict(params, w1=w1_f32, w2=w2_f32)  # f32 copies for the reference
    return params, ref_params


# ----------------------------- pure-JAX reference -----------------------------

def feedforward_ref(x, p, *, eps=1e-5):
    mean = jnp.mean(x, axis=-1, keepdims=True)
    var = jnp.mean((x - mean) ** 2, axis=-1, keepdims=True)
    h = (x - mean) * jax.lax.rsqrt(var + eps) * p["ln_g"][0] + p["ln_b"][0]
    h = h @ p["w1"] + p["b1"][0]
    h = 0.5 * h * (1.0 + jax.lax.erf(h / jnp.sqrt(2.0)))
    return h @ p["w2"] + p["b2"][0]


# ----------------------------- main -----------------------------

if __name__ == "__main__":
    # Small shapes consistent with the module: x is (batch, seq, dim).
    B, N, dim, hidden_dim = 2, 8, 32, 64

    key = jax.random.PRNGKey(0)
    key, kx, kp = jax.random.split(key, 3)
    x = jax.random.normal(kx, (B, N, dim), jnp.float32)

    params, ref_params = init_params(kp, dim=dim, hidden_dim=hidden_dim)

    out = feedforward(x, params)
    out = jax.block_until_ready(out)
    assert out.shape == (B, N, dim)

    ref = feedforward_ref(x, ref_params)
    max_err = float(jnp.max(jnp.abs(out - ref)))
    assert max_err < 2e-2, f"max abs error too large: {max_err}"

    print("KERNEL_OK")
</pallas_src>

<mosaic_0001>
module attributes {stable_mosaic.version = 11 : i64} {
  func.func @feedforward_kernel(%arg0: i32, %arg1: i32, %arg2: memref<16x128xf32, #tpu.memory_space<vmem>>, %arg3: memref<1x128xf32, #tpu.memory_space<vmem>>, %arg4: memref<1x128xf32, #tpu.memory_space<vmem>>, %arg5: memref<128x128xbf16, #tpu.memory_space<vmem>>, %arg6: memref<1x128xf32, #tpu.memory_space<vmem>>, %arg7: memref<128x128xbf16, #tpu.memory_space<vmem>>, %arg8: memref<1x128xf32, #tpu.memory_space<vmem>>, %arg9: memref<16x128xf32, #tpu.memory_space<vmem>>, %arg10: memref<16x128xbf16, #tpu.memory_space<vmem>>, %arg11: memref<16x128xf32, #tpu.memory_space<vmem>>) attributes {dimension_semantics = [#tpu.dimension_semantics<parallel>, #tpu.dimension_semantics<arbitrary>], iteration_bounds = array<i64: 1, 1>, scalar_prefetch = 0 : i64, scratch_operands = 2 : i64, tpu.core_type = #tpu.core_type<tc>, window_params = [{transform_indices = @transform_0, window_bounds = array<i64: 16, 128>}, {pipeline_mode = #tpu.pipeline_mode<synchronous>, transform_indices = @transform_1, window_bounds = array<i64: 1, 128>}, {pipeline_mode = #tpu.pipeline_mode<synchronous>, transform_indices = @transform_2, window_bounds = array<i64: 1, 128>}, {transform_indices = @transform_3, window_bounds = array<i64: 128, 128>}, {transform_indices = @transform_4, window_bounds = array<i64: 1, 128>}, {transform_indices = @transform_5, window_bounds = array<i64: 128, 128>}, {pipeline_mode = #tpu.pipeline_mode<synchronous>, transform_indices = @transform_6, window_bounds = array<i64: 1, 128>}, {transform_indices = @transform_7, window_bounds = array<i64: 16, 128>}]} {
    %c0_i32 = arith.constant 0 : i32
    %0 = arith.cmpi eq, %arg1, %c0_i32 : i32
    %1 = arith.extui %0 : i1 to i32
    %c0_i32_0 = arith.constant 0 : i32
    %2 = arith.cmpi ne, %1, %c0_i32_0 : i32
    scf.if %2 {
      %c0_18 = arith.constant 0 : index
      %c0_19 = arith.constant 0 : index
      %26 = vector.load %arg2[%c0_18, %c0_19] : memref<16x128xf32, #tpu.memory_space<vmem>>, vector<16x128xf32>
      %27 = tpu.iota {dimensions = array<i32: 1>} : vector<16x128xi32>
      %c32_i32 = arith.constant 32 : i32
      %28 = vector.broadcast %c32_i32 : i32 to vector<16x128xi32>
      %29 = arith.cmpi slt, %27, %28 : vector<16x128xi32>
      %30 = arith.extui %29 : vector<16x128xi1> to vector<16x128xi32>
      %31 = arith.sitofp %30 : vector<16x128xi32> to vector<16x128xf32>
      %cst_20 = arith.constant dense<0.000000e+00> : vector<16xf32>
      %32 = vector.multi_reduction <add>, %26, %cst_20 [1] : vector<16x128xf32> to vector<16xf32>
      %33 = vector.shape_cast %32 : vector<16xf32> to vector<16x1xf32>
      %cst_21 = arith.constant 3.125000e-02 : f32
      %34 = vector.broadcast %cst_21 : f32 to vector<16x1xf32>
      %35 = arith.mulf %33, %34 : vector<16x1xf32>
      %36 = vector.broadcast %35 : vector<16x1xf32> to vector<16x128xf32>
      %37 = arith.subf %26, %36 : vector<16x128xf32>
      %38 = arith.mulf %37, %37 : vector<16x128xf32>
      %39 = arith.mulf %38, %31 : vector<16x128xf32>
      %cst_22 = arith.constant dense<0.000000e+00> : vector<16xf32>
      %40 = vector.multi_reduction <add>, %39, %cst_22 [1] : vector<16x128xf32> to vector<16xf32>
      %41 = vector.shape_cast %40 : vector<16xf32> to vector<16x1xf32>
      %cst_23 = arith.constant 3.125000e-02 : f32
      %42 = vector.broadcast %cst_23 : f32 to vector<16x1xf32>
      %43 = arith.mulf %41, %42 : vector<16x1xf32>
      %cst_24 = arith.constant 9.99999974E-6 : f32
      %44 = vector.broadcast %cst_24 : f32 to vector<16x1xf32>
      %45 = arith.addf %43, %44 : vector<16x1xf32>
      %46 = math.rsqrt %45 : vector<16x1xf32>
      %47 = vector.broadcast %46 : vector<16x1xf32> to vector<16x128xf32>
      %48 = arith.mulf %37, %47 : vector<16x128xf32>
      %c0_25 = arith.constant 0 : index
      %c0_26 = arith.constant 0 : index
      %49 = vector.load %arg3[%c0_25, %c0_26] : memref<1x128xf32, #tpu.memory_space<vmem>>, vector<1x128xf32>
      %50 = vector.broadcast %49 : vector<1x128xf32> to vector<16x128xf32>
      %51 = arith.mulf %48, %50 : vector<16x128xf32>
      %c0_27 = arith.constant 0 : index
      %c0_28 = arith.constant 0 : index
      %52 = vector.load %arg4[%c0_27, %c0_28] : memref<1x128xf32, #tpu.memory_space<vmem>>, vector<1x128xf32>
      %53 = vector.broadcast %52 : vector<1x128xf32> to vector<16x128xf32>
      %54 = arith.addf %51, %53 : vector<16x128xf32>
      %55 = arith.truncf %54 : vector<16x128xf32> to vector<16x128xbf16>
      %c0_29 = arith.constant 0 : index
      %c0_30 = arith.constant 0 : index
      %56 = vector.load %arg10[%c0_29, %c0_30] : memref<16x128xbf16, #tpu.memory_space<vmem>>, vector<16x128xbf16>
      tpu.vector_store %arg10[%c0_29, %c0_30], %55 {strides = array<i32>} : memref<16x128xbf16, #tpu.memory_space<vmem>>, vector<16x128xbf16>,
      %cst_31 = arith.constant 0.000000e+00 : f32
      %57 = vector.broadcast %cst_31 : f32 to vector<16x128xf32>
      %c0_32 = arith.constant 0 : index
      %c0_33 = arith.constant 0 : index
      %58 = vector.load %arg11[%c0_32, %c0_33] : memref<16x128xf32, #tpu.memory_space<vmem>>, vector<16x128xf32>
      tpu.vector_store %arg11[%c0_32, %c0_33], %57 {strides = array<i32>} : memref<16x128xf32, #tpu.memory_space<vmem>>, vector<16x128xf32>,
    } else {
    }
    %c0 = arith.constant 0 : index
    %c0_1 = arith.constant 0 : index
    %3 = vector.load %arg10[%c0, %c0_1] : memref<16x128xbf16, #tpu.memory_space<vmem>>, vector<16x128xbf16>
    %c0_2 = arith.constant 0 : index
    %c0_3 = arith.constant 0 : index
    %4 = vector.load %arg5[%c0_2, %c0_3] : memref<128x128xbf16, #tpu.memory_space<vmem>>, vector<128x128xbf16>
    %cst = arith.constant dense<0.000000e+00> : vector<16x128xf32>
    %5 = tpu.matmul %3, %4, %cst {dimension_numbers = #tpu.dot_dimension_numbers<[1], [0], [0], [1], [0, 0, 1, 1], [], []>} : vector<16x128xbf16>, vector<128x128xbf16>, vector<16x128xf32> -> vector<16x128xf32>
    %c0_4 = arith.constant 0 : index
    %c0_5 = arith.constant 0 : index
    %6 = vector.load %arg6[%c0_4, %c0_5] : memref<1x128xf32, #tpu.memory_space<vmem>>, vector<1x128xf32>
    %7 = vector.broadcast %6 : vector<1x128xf32> to vector<16x128xf32>
    %8 = arith.addf %5, %7 : vector<16x128xf32>
    %cst_6 = arith.constant 5.000000e-01 : f32
    %9 = vector.broadcast %cst_6 : f32 to vector<16x128xf32>
    %10 = arith.mulf %9, %8 : vector<16x128xf32>
    %cst_7 = arith.constant 0.707106769 : f32
    %11 = vector.broadcast %cst_7 : f32 to vector<16x128xf32>
    %12 = arith.mulf %8, %11 : vector<16x128xf32>
    %13 = math.erf %12 : vector<16x128xf32>
    %cst_8 = arith.constant 1.000000e+00 : f32
    %14 = vector.broadcast %cst_8 : f32 to vector<16x128xf32>
    %15 = arith.addf %14, %13 : vector<16x128xf32>
    %16 = arith.mulf %10, %15 : vector<16x128xf32>
    %c0_9 = arith.constant 0 : index
    %c0_10 = arith.constant 0 : index
    %17 = vector.load %arg11[%c0_9, %c0_10] : memref<16x128xf32, #tpu.memory_space<vmem>>, vector<16x128xf32>
    %18 = arith.truncf %16 : vector<16x128xf32> to vector<16x128xbf16>
    %c0_11 = arith.constant 0 : index
    %c0_12 = arith.constant 0 : index
    %19 = vector.load %arg7[%c0_11, %c0_12] : memref<128x128xbf16, #tpu.memory_space<vmem>>, vector<128x128xbf16>
    %cst_13 = arith.constant dense<0.000000e+00> : vector<16x128xf32>
    %20 = tpu.matmul %18, %19, %cst_13 {dimension_numbers = #tpu.dot_dimension_numbers<[1], [0], [0], [1], [0, 0, 1, 1], [], []>} : vector<16x128xbf16>, vector<128x128xbf16>, vector<16x128xf32> -> vector<16x128xf32>
    %21 = arith.addf %17, %20 : vector<16x128xf32>
    %c0_14 = arith.constant 0 : index
    %c0_15 = arith.constant 0 : index
    %22 = vector.load %arg11[%c0_14, %c0_15] : memref<16x128xf32, #tpu.memory_space<vmem>>, vector<16x128xf32>
    tpu.vector_store %arg11[%c0_14, %c0_15], %21 {strides = array<i32>} : memref<16x128xf32, #tpu.memory_space<vmem>>, vector<16x128xf32>,
    %c0_i32_16 = arith.constant 0 : i32
    %23 = arith.cmpi eq, %arg1, %c0_i32_16 : i32
    %24 = arith.extui %23 : i1 to i32
    %c0_i32_17 = arith.constant 0 : i32
    %25 = arith.cmpi ne, %24, %c0_i32_17 : i32
    scf.if %25 {
      %c0_18 = arith.constant 0 : index
      %c0_19 = arith.constant 0 : index
      %26 = vector.load %arg11[%c0_18, %c0_19] : memref<16x128xf32, #tpu.memory_space<vmem>>, vector<16x128xf32>
      %c0_20 = arith.constant 0 : index
      %c0_21 = arith.constant 0 : index
      %27 = vector.load %arg8[%c0_20, %c0_21] : memref<1x128xf32, #tpu.memory_space<vmem>>, vector<1x128xf32>
      %28 = vector.broadcast %27 : vector<1x128xf32> to vector<16x128xf32>
      %29 = arith.addf %26, %28 : vector<16x128xf32>
      %c0_22 = arith.constant 0 : index
      %c0_23 = arith.constant 0 : index
      %30 = vector.load %arg9[%c0_22, %c0_23] : memref<16x128xf32, #tpu.memory_space<vmem>>, vector<16x128xf32>
      tpu.vector_store %arg9[%c0_22, %c0_23], %29 {strides = array<i32>} : memref<16x128xf32, #tpu.memory_space<vmem>>, vector<16x128xf32>,
    } else {
    }
    return
  }
  func.func @transform_0(%arg0: i32, %arg1: i32) -> (i32, i32) {
    %c0_i32 = arith.constant 0 : i32
    %c0_i32_0 = arith.constant 0 : i32
    return %arg0, %c0_i32 : i32, i32
  }
  func.func @transform_1(%arg0: i32, %arg1: i32) -> (i32, i32) {
    %c0_i32 = arith.constant 0 : i32
    %c0_i32_0 = arith.constant 0 : i32
    %c0_i32_1 = arith.constant 0 : i32
    return %c0_i32, %c0_i32_0 : i32, i32
  }
  func.func @transform_2(%arg0: i32, %arg1: i32) -> (i32, i32) {
    %c0_i32 = arith.constant 0 : i32
    %c0_i32_0 = arith.constant 0 : i32
    %c0_i32_1 = arith.constant 0 : i32
    return %c0_i32, %c0_i32_0 : i32, i32
  }
  func.func @transform_3(%arg0: i32, %arg1: i32) -> (i32, i32) {
    %c0_i32 = arith.constant 0 : i32
    %c0_i32_0 = arith.constant 0 : i32
    return %c0_i32, %arg1 : i32, i32
  }
  func.func @transform_4(%arg0: i32, %arg1: i32) -> (i32, i32) {
    %c0_i32 = arith.constant 0 : i32
    %c0_i32_0 = arith.constant 0 : i32
    return %c0_i32, %arg1 : i32, i32
  }
  func.func @transform_5(%arg0: i32, %arg1: i32) -> (i32, i32) {
    %c0_i32 = arith.constant 0 : i32
    %c0_i32_0 = arith.constant 0 : i32
    return %arg1, %c0_i32 : i32, i32
  }
  func.func @transform_6(%arg0: i32, %arg1: i32) -> (i32, i32) {
    %c0_i32 = arith.constant 0 : i32
    %c0_i32_0 = arith.constant 0 : i32
    %c0_i32_1 = arith.constant 0 : i32
    return %c0_i32, %c0_i32_0 : i32, i32
  }
  func.func @transform_7(%arg0: i32, %arg1: i32) -> (i32, i32) {
    %c0_i32 = arith.constant 0 : i32
    %c0_i32_0 = arith.constant 0 : i32
    return %arg0, %c0_i32 : i32, i32
  }
}

</mosaic_0001>

<llo_original>
// kernel: tpu_custom_call.1
$region0: #{tpu_custom_call.1}
  #allocation0 [shape = 'u32[]', space=smem, size = 0x4, offset = 0x4, fixed_abs, tag = 'smem constant byte address 0x4 - core index']
  #allocation1 [shape = 'u32[72,128]{1,0:T(1,128)}', space=vmem, size = 0x9000, scoped, tag = 'internal scratch']
  #allocation2 [shape = 'bf16[16,128]{1,0:T(8,128)(2,1)}', space=vmem, size = 0x1000, scoped, tag = 'scratch operand']
  #allocation3 [shape = 'f32[16,128]{1,0:T(8,128)}', space=vmem, size = 0x2000, scoped, tag = 'scratch operand']
  %s0 = inlined_call_operand.hbm [shape: f32[16,128], index: 0, kind: input, shape index: {}]
  %s1 = inlined_call_operand.hbm [shape: f32[1,128], index: 1, kind: input, shape index: {}]
  %s2 = inlined_call_operand.vmem [shape: f32[1,128], index: 2, kind: input, shape index: {}]
  %s3 = inlined_call_operand.hbm [shape: bf16[128,128], index: 3, kind: input, shape index: {}]
  %s4 = inlined_call_operand.vmem [shape: f32[1,128], index: 4, kind: input, shape index: {}]
  %s5 = inlined_call_operand.hbm [shape: bf16[128,128], index: 5, kind: input, shape index: {}]
  %s6 = inlined_call_operand.vmem [shape: f32[1,128], index: 6, kind: input, shape index: {}]
  %s7 = inlined_call_operand.hbm [shape: f32[16,128], index: 7, kind: output, shape index: {}]
  %s8 = sld [smem:[#allocation0]]
  $region62: #{tpu_custom_call.1} parent=0
    _
  %s10 = ssub.s32 1, %s8
  %s11 = scalar_select 0, %s10, %s8
  $region1: #{tpu_custom_call.1} parent=0
    #allocation4 [shape = 'u8[8192]{0}', space=vmem, size = 0x2000, scoped, tag = 'input window, operand 0, single buffered']
    #allocation5 [shape = 's32[1]{0}', space=sflag, size = 0x4, scoped, tag = 'scoped memory for tpu_custom_call.1']
    #allocation6 [shape = 's32[1]{0}', space=sflag, size = 0x4, scoped, tag = 'scoped memory for tpu_custom_call.1']
    #allocation7 [shape = 'u8[512]{0}', space=vmem, size = 0x400, scoped, tag = 'input window, operand 1, single buffered']
    #allocation8 [shape = 's32[1]{0}', space=sflag, size = 0x4, scoped, tag = 'scoped memory for tpu_custom_call.1']
    #allocation9 [shape = 'u8[32768]{0}', space=vmem, size = 0x8000, scoped, tag = 'input window, operand 3, single buffered']
    #allocation10 [shape = 'u8[32768]{0}', space=vmem, size = 0x8000, scoped, tag = 'input window, operand 5, single buffered']
    #allocation11 [shape = 's32[1]{0}', space=sflag, size = 0x4, scoped, tag = 'scoped memory for tpu_custom_call.1']
    #allocation12 [shape = 'u8[8192]{0}', space=vmem, size = 0x2000, scoped, tag = 'output window, operand 0, single buffered']
    %12 = vsyncpa [#allocation5], 0
    %13 = vsyncpa [#allocation8], 0
    %14 = vsyncpa [#allocation11], 0
    %15 = vsyncpa [#allocation6], 0
    // Predicated region
    $region2: #{tpu_custom_call.1} parent=1 // pred_check
      _
    $region3: #{tpu_custom_call.1} parent=1 // pred_check_branch
      %17 = sbr.rel (0) target = $region5
    $region4: #{tpu_custom_call.1} parent=1 // pred_region
      %19 = vsyncadd [#allocation5], 0
      %s20 = sshll.u32 %s0, 4
      %s21 = int_to_ptr.hbm [resolvable:$true] %s20
      %s22 = sshll.u32 [#allocation4], 4
      %s23 = int_to_ptr.vmem [resolvable:$true] %s22
      %28 = dma.hbm_to_vmem [thread:$0]  %s21, 256, %s23, [#allocation5], 128, 128, 8
    $region5: #{tpu_custom_call.1} parent=1 // pred_fallthru
      _
    // Predicated region
    $region6: #{tpu_custom_call.1} parent=1 // pred_check
      _
    $region7: #{tpu_custom_call.1} parent=1 // pred_check_branch
      %30 = sbr.rel (0) target = $region9
    $region8: #{tpu_custom_call.1} parent=1 // pred_region
      %32 = vsyncadd [#allocation8], 0
      %s34 = sshll.u32 %s1, 4
      %s35 = int_to_ptr.hbm [resolvable:$true] %s34
      %s36 = sshll.u32 [#allocation7], 4
      %s37 = int_to_ptr.vmem [resolvable:$true] %s36
      %39 = dma.hbm_to_vmem [thread:$0]  %s35, 16, %s37, [#allocation8]
    $region9: #{tpu_custom_call.1} parent=1 // pred_fallthru
      _
    // Predicated region
    $region10: #{tpu_custom_call.1} parent=1 // pred_check
      _
    $region11: #{tpu_custom_call.1} parent=1 // pred_check_branch
      %41 = sbr.rel (0) target = $region13
    $region12: #{tpu_custom_call.1} parent=1 // pred_region
      _
    $region13: #{tpu_custom_call.1} parent=1 // pred_fallthru
      _
    // Predicated region
    $region14: #{tpu_custom_call.1} parent=1 // pred_check
      _
    $region15: #{tpu_custom_call.1} parent=1 // pred_check_branch
      %43 = sbr.rel (0) target = $region17
    $region16: #{tpu_custom_call.1} parent=1 // pred_region
      %45 = vsyncadd [#allocation8], 0
      %s46 = sshll.u32 %s3, 4
      %s47 = int_to_ptr.hbm [resolvable:$true] %s46
      %s48 = sshll.u32 [#allocation9], 4
      %s49 = int_to_ptr.vmem [resolvable:$true] %s48
      %54 = dma.hbm_to_vmem [thread:$0]  %s47, 1024, %s49, [#allocation8], 64, 64, 4
    $region17: #{tpu_custom_call.1} parent=1 // pred_fallthru
      _
    // Predicated region
    $region18: #{tpu_custom_call.1} parent=1 // pred_check
      _
    $region19: #{tpu_custom_call.1} parent=1 // pred_check_branch
      %56 = sbr.rel (0) target = $region21
    $region20: #{tpu_custom_call.1} parent=1 // pred_region
      _
    $region21: #{tpu_custom_call.1} parent=1 // pred_fallthru
      _
    // Predicated region
    $region22: #{tpu_custom_call.1} parent=1 // pred_check
      _
    $region23: #{tpu_custom_call.1} parent=1 // pred_check_branch
      %58 = sbr.rel (0) target = $region25
    $region24: #{tpu_custom_call.1} parent=1 // pred_region
      %60 = vsyncadd [#allocation11], 0
      %s61 = sshll.u32 %s5, 4
      %s62 = int_to_ptr.hbm [resolvable:$true] %s61
      %s63 = sshll.u32 [#allocation10], 4
      %s64 = int_to_ptr.vmem [resolvable:$true] %s63
      %69 = dma.hbm_to_vmem [thread:$0]  %s62, 1024, %s64, [#allocation11], 64, 64, 4
    $region25: #{tpu_custom_call.1} parent=1 // pred_fallthru
      _
    // Predicated region
    $region26: #{tpu_custom_call.1} parent=1 // pred_check
      _
    $region27: #{tpu_custom_call.1} parent=1 // pred_check_branch
      %71 = sbr.rel (0) target = $region29
    $region28: #{tpu_custom_call.1} parent=1 // pred_region
      _
    $region29: #{tpu_custom_call.1} parent=1 // pred_fallthru
      _
    // Predicated region
    $region30: #{tpu_custom_call.1} parent=1 // pred_check
      _
    $region31: #{tpu_custom_call.1} parent=1 // pred_check_branch
      %73 = sbr.rel (0) target = $region33
    $region32: #{tpu_custom_call.1} parent=1 // pred_region
      %75 = dma.done [#allocation5], 256
    $region33: #{tpu_custom_call.1} parent=1 // pred_fallthru
      _
    // Predicated region
    $region34: #{tpu_custom_call.1} parent=1 // pred_check
      _
    $region35: #{tpu_custom_call.1} parent=1 // pred_check_branch
      %77 = sbr.rel (0) target = $region37
    $region36: #{tpu_custom_call.1} parent=1 // pred_region
      %79 = dma.done [#allocation8], 16
    $region37: #{tpu_custom_call.1} parent=1 // pred_fallthru
      _
    // Predicated region
    $region38: #{tpu_custom_call.1} parent=1 // pred_check
      _
    $region39: #{tpu_custom_call.1} parent=1 // pred_check_branch
      %81 = sbr.rel (0) target = $region41
    $region40: #{tpu_custom_call.1} parent=1 // pred_region
      %83 = dma.done [#allocation8], 1024
    $region41: #{tpu_custom_call.1} parent=1 // pred_fallthru
      _
    // Predicated region
    $region42: #{tpu_custom_call.1} parent=1 // pred_check
      _
    $region43: #{tpu_custom_call.1} parent=1 // pred_check_branch
      %85 = sbr.rel (0) target = $region45
    $region44: #{tpu_custom_call.1} parent=1 // pred_region
      %87 = dma.done [#allocation11], 1024
    $region45: #{tpu_custom_call.1} parent=1 // pred_fallthru
      _
    %p88 = scmp.eq.s32.totalorder 0, 0
    // Predicated region
    $region46: #{tpu_custom_call.1} parent=1 // pred_check
      %p89 = pneg %p88
    $region47: #{tpu_custom_call.1} parent=1 // pred_check_branch
      %91 = sbr.rel (%p89) target = $region49
    $region48: #{tpu_custom_call.1} parent=1 // pred_region
      %v92 = vld [vmem:[#allocation4] sm:$0xff]
      %v93 = vld [vmem:[#allocation4 + $0x8] sm:$0xff]
      %v94 = vlaneseq
      %v95 = vand.u32 %v94, 127
      %vm96 = vcmp.lt.s32.totalorder %v95, 32
      %v97 = vsel %vm96, 1, 0
      %v98 = vcvt.s32.f32 %v97
      %99 = vadd.xlane.f32.xlu0 %v92
      %v100 = vpop.xlane.xlu0 %99
      %101 = vadd.xlane.f32.xlu0 %v93
      %v102 = vpop.xlane.xlu0 %101
      %v103 = vmul.f32 %v100, 0.03125
      %v104 = vmul.f32 %v102, 0.03125
      %v105 = vsub.f32 %v92, %v103
      %v106 = vsub.f32 %v93, %v104
      %v107 = vmul.f32 %v105, %v105
      %v108 = vmul.f32 %v106, %v106
      %v109 = vmul.f32 %v107, %v98
      %v110 = vmul.f32 %v108, %v98
      %111 = vadd.xlane.f32.xlu0 %v109
      %v112 = vpop.xlane.xlu0 %111
      %113 = vadd.xlane.f32.xlu0 %v110
      %v114 = vpop.xlane.xlu0 %113
      %v115 = vmul.f32 %v112, 0.03125
      %v116 = vmul.f32 %v114, 0.03125
      %v117 = vadd.f32 %v115, 1e-05
      %v118 = vadd.f32 %v116, 1e-05
      %v119 = vrsqrt.pop %v117
      %v120 = vmul.f32 %v119, %v117
      %v121 = vmul.f32 %v120, %v119
      %v122 = vmul.f32 0.5, %v121
      %v123 = vsub.f32 1.5, %v122
      %v124 = vmul.f32 %v119, %v123
      %vm125 = vweird.f32 %v117
      %vm126 = vweird.f32 %v119
      %vm127 = vmor %vm125, %vm126
      %v128 = vsel %vm127, %v119, %v124
      %v129 = vrsqrt.pop %v118
      %v130 = vmul.f32 %v129, %v118
      %v131 = vmul.f32 %v130, %v129
      %v132 = vmul.f32 0.5, %v131
      %v133 = vsub.f32 1.5, %v132
      %v134 = vmul.f32 %v129, %v133
      %vm135 = vweird.f32 %v118
      %vm136 = vweird.f32 %v129
      %vm137 = vmor %vm135, %vm136
      %v138 = vsel %vm137, %v129, %v134
      %v139 = vmul.f32 %v105, %v128
      %v140 = vmul.f32 %v106, %v138
      %v141 = vld [vmem:[#allocation7] sm:$0x1]
      %v143 = vperm.slane %v141, 0
      %v145 = vmul.f32 %v139, %v143
      %v146 = vmul.f32 %v140, %v143
      %v147 = vld [vmem:[%s2] sm:$0x1]
      %v149 = vperm.slane %v147, 0
      %v151 = vadd.f32 %v145, %v149
      %v152 = vadd.f32 %v146, %v149
      %v153 = vpack.c.bf16 %v151, %v151
      %v154 = vpack.c.bf16 %v152, %v152
      %155 = vst [vmem:[#allocation2] sm:$0xf] %v153
      %156 = vst [vmem:[#allocation2 + $0x4] sm:$0xf] %v154
      %157 = vst [vmem:[#allocation3] sm:$0xff] 0.0
      %158 = vst [vmem:[#allocation3 + $0x8] sm:$0xff] 0.0
    $region49: #{tpu_custom_call.1} parent=1 // pred_fallthru
      _
    %v159 = vld [vmem:[#allocation2] sm:$0xf]
    %v160 = vld [vmem:[#allocation2 + $0x4] sm:$0xf]
    %v161 = vld [vmem:[#allocation9] sm:$0xf]
    %v162 = vld [vmem:[#allocation9 + $0x4] sm:$0xf]
    %v163 = vld [vmem:[#allocation9 + $0x8] sm:$0xf]
    %v164 = vld [vmem:[#allocation9 + $0xc] sm:$0xf]
    %v165 = vld [vmem:[#allocation9 + $0x10] sm:$0xf]
    %v166 = vld [vmem:[#allocation9 + $0x14] sm:$0xf]
    %v167 = vld [vmem:[#allocation9 + $0x18] sm:$0xf]
    %v168 = vld [vmem:[#allocation9 + $0x1c] sm:$0xf]
    %v169 = vld [vmem:[#allocation9 + $0x20] sm:$0xf]
    %v170 = vld [vmem:[#allocation9 + $0x24] sm:$0xf]
    %v171 = vld [vmem:[#allocation9 + $0x28] sm:$0xf]
    %v172 = vld [vmem:[#allocation9 + $0x2c] sm:$0xf]
    %v173 = vld [vmem:[#allocation9 + $0x30] sm:$0xf]
    %v174 = vld [vmem:[#allocation9 + $0x34] sm:$0xf]
    %v175 = vld [vmem:[#allocation9 + $0x38] sm:$0xf]
    %v176 = vld [vmem:[#allocation9 + $0x3c] sm:$0xf]
    %v177 = vld [vmem:[%s4] sm:$0x1]
    %v179 = vperm.slane %v177, 0
    %v183 = vunpack.c.l.b16 %v159
    %v184 = vunpack.c.l.b16 %v160
    %v185 = vpack.c.b16 %v184, %v183
    %v203 = vunpack.c.l.b16 %v161
    %v204 = vunpack.c.l.b16 %v162
    %v205 = vunpack.c.l.b16 %v163
    %v206 = vunpack.c.l.b16 %v164
    %v207 = vunpack.c.l.b16 %v165
    %v208 = vunpack.c.l.b16 %v166
    %v209 = vunpack.c.l.b16 %v167
    %v210 = vunpack.c.l.b16 %v168
    %v211 = vunpack.c.l.b16 %v169
    %v212 = vunpack.c.l.b16 %v170
    %v213 = vunpack.c.l.b16 %v171
    %v214 = vunpack.c.l.b16 %v172
    %v215 = vunpack.c.l.b16 %v173
    %v216 = vunpack.c.l.b16 %v174
    %v217 = vunpack.c.l.b16 %v175
    %v218 = vunpack.c.l.b16 %v176
    %v219 = vpack.c.b16 %v204, %v203
    %v220 = vpack.c.b16 %v206, %v205
    %v221 = vpack.c.b16 %v208, %v207
    %v222 = vpack.c.b16 %v210, %v209
    %v223 = vpack.c.b16 %v212, %v211
    %v224 = vpack.c.b16 %v214, %v213
    %v225 = vpack.c.b16 %v216, %v215
    %v226 = vpack.c.b16 %v218, %v217
    %235 = vmatpush.bf16.msra.mxu0 %v226
    %236 = vmatpush.bf16.msra.mxu0 %v225
    %237 = vmatpush.bf16.msra.mxu0 %v224
    %238 = vmatpush.bf16.msra.mxu0 %v223
    %239 = vmatpush.bf16.msra.mxu0 %v222
    %240 = vmatpush.bf16.msra.mxu0 %v221
    %241 = vmatpush.bf16.msra.mxu0 %v220
    %242 = vmatpush.bf16.msra.mxu0 %v219
    %243 = vmatmul.bf16.gmra.mxu0 %v185
    %v244 = vpop.f32.mrf.mxu0
    %v245 = vadd.f32 %v179, %v244
    %v246 = vpop.f32.mrf.mxu0
    %v247 = vadd.f32 %v179, %v246
    %248 = vdwg.mxu0
    %v249 = vmul.f32 %v245, 0.5
    %v250 = vmul.f32 %v247, 0.5
    %v251 = vmul.f32 %v245, 0.70710677
    %v252 = vmul.f32 %v247, 0.70710677
    %v253 = vmul.f32 %v251, %v251
    %v254 = vmin.f32 16.0, %v253
    %v255 = vmul.f32 %v254, 2.1237322e-06
    %v256 = vadd.f32 %v255, 0.00028619796
    %v257 = vmul.f32 %v254, %v256
    %v258 = vadd.f32 %v257, 0.0036580483
    %v259 = vmul.f32 %v254, %v258
    %v260 = vadd.f32 %v259, 0.05243302
    %v261 = vmul.f32 %v254, %v260
    %v262 = vadd.f32 %v261, 0.18741608
    %v263 = vmul.f32 %v254, %v262
    %v264 = vadd.f32 %v263, 1.1283791
    %v265 = vmul.f32 %v251, %v264
    %v266 = vmul.f32 %v254, 3.8918573e-05
    %v267 = vadd.f32 %v266, 0.001143296
    %v268 = vmul.f32 %v254, %v267
    %v269 = vadd.f32 %v268, 0.014752088
    %v270 = vmul.f32 %v254, %v269
    %v271 = vadd.f32 %v270, 0.112945676
    %v272 = vmul.f32 %v254, %v271
    %v273 = vadd.f32 %v272, 0.4994258
    %v274 = vmul.f32 %v254, %v273
    %v275 = vadd.f32 %v274, 1.0
    %v276 = vrcp.pop %v275
    %v277 = vmul.f32 %v275, %v276
    %v278 = vsub.f32 1.0, %v277
    %v279 = vmul.f32 %v276, %v278
    %v280 = vadd.f32 %v276, %v279
    %vm281 = vweird.f32 %v275
    %vm282 = vweird.f32 %v276
    %vm283 = vmor %vm281, %vm282
    %v284 = vsel %vm283, %v276, %v280
    %v285 = vand.u32 2147483647, %v275
    %vm286 = vcmp.eq.f32.partialorder %v285, 8.507059e+37
    %v287 = vand.u32 %v275, 2147483648
    %v288 = vor.u32 1.1754944e-38, %v287
    %v289 = vsel %vm286, %v288, %v284
    %v290 = vmul.f32 %v265, %v289
    %v291 = vmin.f32 %v290, 1.0
    %v292 = vmax.f32 %v291, -1.0
    %v293 = vmul.f32 %v252, %v252
    %v294 = vmin.f32 16.0, %v293
    %v295 = vmul.f32 %v294, 2.1237322e-06
    %v296 = vadd.f32 %v295, 0.00028619796
    %v297 = vmul.f32 %v294, %v296
    %v298 = vadd.f32 %v297, 0.0036580483
    %v299 = vmul.f32 %v294, %v298
    %v300 = vadd.f32 %v299, 0.05243302
    %v301 = vmul.f32 %v294, %v300
    %v302 = vadd.f32 %v301, 0.18741608
    %v303 = vmul.f32 %v294, %v302
    %v304 = vadd.f32 %v303, 1.1283791
    %v305 = vmul.f32 %v252, %v304
    %v306 = vmul.f32 %v294, 3.8918573e-05
    %v307 = vadd.f32 %v306, 0.001143296
    %v308 = vmul.f32 %v294, %v307
    %v309 = vadd.f32 %v308, 0.014752088
    %v310 = vmul.f32 %v294, %v309
    %v311 = vadd.f32 %v310, 0.112945676
    %v312 = vmul.f32 %v294, %v311
    %v313 = vadd.f32 %v312, 0.4994258
    %v314 = vmul.f32 %v294, %v313
    %v315 = vadd.f32 %v314, 1.0
    %v316 = vrcp.pop %v315
    %v317 = vmul.f32 %v315, %v316
    %v318 = vsub.f32 1.0, %v317
    %v319 = vmul.f32 %v316, %v318
    %v320 = vadd.f32 %v316, %v319
    %vm321 = vweird.f32 %v315
    %vm322 = vweird.f32 %v316
    %vm323 = vmor %vm321, %vm322
    %v324 = vsel %vm323, %v316, %v320
    %v325 = vand.u32 2147483647, %v315
    %vm326 = vcmp.eq.f32.partialorder %v325, 8.507059e+37
    %v327 = vand.u32 %v315, 2147483648
    %v328 = vor.u32 1.1754944e-38, %v327
    %v329 = vsel %vm326, %v328, %v324
    %v330 = vmul.f32 %v305, %v329
    %v331 = vmin.f32 %v330, 1.0
    %v332 = vmax.f32 %v331, -1.0
    %v333 = vadd.f32 %v292, 1.0
    %v334 = vadd.f32 %v332, 1.0
    %v335 = vmul.f32 %v249, %v333
    %v336 = vmul.f32 %v250, %v334
    %v337 = vld [vmem:[#allocation3] sm:$0xff]
    %v338 = vld [vmem:[#allocation3 + $0x8] sm:$0xff]
    %v339 = vpack.c.bf16 %v336, %v335
    %v340 = vld [vmem:[#allocation10] sm:$0xf]
    %v341 = vld [vmem:[#allocation10 + $0x4] sm:$0xf]
    %v342 = vld [vmem:[#allocation10 + $0x8] sm:$0xf]
    %v343 = vld [vmem:[#allocation10 + $0xc] sm:$0xf]
    %v344 = vld [vmem:[#allocation10 + $0x10] sm:$0xf]
    %v345 = vld [vmem:[#allocation10 + $0x14] sm:$0xf]
    %v346 = vld [vmem:[#allocation10 + $0x18] sm:$0xf]
    %v347 = vld [vmem:[#allocation10 + $0x1c] sm:$0xf]
    %v348 = vld [vmem:[#allocation10 + $0x20] sm:$0xf]
    %v349 = vld [vmem:[#allocation10 + $0x24] sm:$0xf]
    %v350 = vld [vmem:[#allocation10 + $0x28] sm:$0xf]
    %v351 = vld [vmem:[#allocation10 + $0x2c] sm:$0xf]
    %v352 = vld [vmem:[#allocation10 + $0x30] sm:$0xf]
    %v353 = vld [vmem:[#allocation10 + $0x34] sm:$0xf]
    %v354 = vld [vmem:[#allocation10 + $0x38] sm:$0xf]
    %v355 = vld [vmem:[#allocation10 + $0x3c] sm:$0xf]
    %v372 = vunpack.c.l.b16 %v340
    %v373 = vunpack.c.l.b16 %v341
    %v374 = vunpack.c.l.b16 %v342
    %v375 = vunpack.c.l.b16 %v343
    %v376 = vunpack.c.l.b16 %v344
    %v377 = vunpack.c.l.b16 %v345
    %v378 = vunpack.c.l.b16 %v346
    %v379 = vunpack.c.l.b16 %v347
    %v380 = vunpack.c.l.b16 %v348
    %v381 = vunpack.c.l.b16 %v349
    %v382 = vunpack.c.l.b16 %v350
    %v383 = vunpack.c.l.b16 %v351
    %v384 = vunpack.c.l.b16 %v352
    %v385 = vunpack.c.l.b16 %v353
    %v386 = vunpack.c.l.b16 %v354
    %v387 = vunpack.c.l.b16 %v355
    %v388 = vpack.c.b16 %v373, %v372
    %v389 = vpack.c.b16 %v375, %v374
    %v390 = vpack.c.b16 %v377, %v376
    %v391 = vpack.c.b16 %v379, %v378
    %v392 = vpack.c.b16 %v381, %v380
    %v393 = vpack.c.b16 %v383, %v382
    %v394 = vpack.c.b16 %v385, %v384
    %v395 = vpack.c.b16 %v387, %v386
    %404 = vmatpush.bf16.msra.mxu0 %v395
    %405 = vmatpush.bf16.msra.mxu0 %v394
    %406 = vmatpush.bf16.msra.mxu0 %v393
    %407 = vmatpush.bf16.msra.mxu0 %v392
    %408 = vmatpush.bf16.msra.mxu0 %v391
    %409 = vmatpush.bf16.msra.mxu0 %v390
    %410 = vmatpush.bf16.msra.mxu0 %v389
    %411 = vmatpush.bf16.msra.mxu0 %v388
    %412 = vmatmul.bf16.gmra.mxu0 %v339
    %v413 = vpop.f32.mrf.mxu0
    %v414 = vadd.f32 0.0, %v413
    %v415 = vpop.f32.mrf.mxu0
    %v416 = vadd.f32 0.0, %v415
    %417 = vdwg.mxu0
    %v418 = vadd.f32 %v337, %v414
    %v419 = vadd.f32 %v338, %v416
    %420 = vst [vmem:[#allocation3] sm:$0xff] %v418
    %421 = vst [vmem:[#allocation3 + $0x8] sm:$0xff] %v419
    // Predicated region
    $region50: #{tpu_custom_call.1} parent=1 // pred_check
      %p422 = pneg %p88
    $region51: #{tpu_custom_call.1} parent=1 // pred_check_branch
      %424 = sbr.rel (%p422) target = $region53
    $region52: #{tpu_custom_call.1} parent=1 // pred_region
      %v425 = vld [vmem:[#allocation3] sm:$0xff]
      %v426 = vld [vmem:[#allocation3 + $0x8] sm:$0xff]
      %v427 = vld [vmem:[%s6] sm:$0x1]
      %v429 = vperm.slane %v427, 0
      %v431 = vadd.f32 %v425, %v429
      %v432 = vadd.f32 %v426, %v429
      %433 = vst [vmem:[#allocation12] sm:$0xff] %v431
      %434 = vst [vmem:[#allocation12 + $0x8] sm:$0xff] %v432
    $region53: #{tpu_custom_call.1} parent=1 // pred_fallthru
      _
    // Predicated region
    $region54: #{tpu_custom_call.1} parent=1 // pred_check
      _
    $region55: #{tpu_custom_call.1} parent=1 // pred_check_branch
      %436 = sbr.rel (0) target = $region57
    $region56: #{tpu_custom_call.1} parent=1 // pred_region
      %438 = vsyncadd [#allocation6], 0
      %s439 = sshll.u32 [#allocation12], 4
      %s440 = int_to_ptr.vmem [resolvable:$true] %s439
      %s441 = sshll.u32 %s7, 4
      %s442 = int_to_ptr.hbm [resolvable:$true] %s441
      %447 = dma.vmem_to_hbm [thread:$0]  %s440, 256, %s442, [#allocation6], 128, 128, 8
    $region57: #{tpu_custom_call.1} parent=1 // pred_fallthru
      _
    // Predicated region
    $region58: #{tpu_custom_call.1} parent=1 // pred_check
      _
    $region59: #{tpu_custom_call.1} parent=1 // pred_check_branch
      %449 = sbr.rel (0) target = $region61
    $region60: #{tpu_custom_call.1} parent=1 // pred_region
      %451 = dma.done [#allocation6], 256
    $region61: #{tpu_custom_call.1} parent=1 // pred_fallthru
      _
    %452 = vsyncpa [#allocation5], 1
    %453 = vsyncpa [#allocation8], 1
    %454 = vsyncpa [#allocation11], 1
    %455 = vsyncpa [#allocation6], 1

</llo_original>
